<compile_context>
chip_gen: v5e
topology: v5e:2x2
jax: 0.10.0
libtpu: 0.0.40
codegen_flags: <defaults>
</compile_context>

<pallas_src>
import functools

import jax
import jax.numpy as jnp
from jax.experimental import pallas as pl
from jax.experimental.pallas import tpu as pltpu

EPS = 0.1  # label-smoothing epsilon (module default)


def _ls_ce_kernel(x_ref, tgt_ref, out_ref, *, eps):
    """One row tile: emit the masked loss-sum partial for this tile."""
    x = x_ref[...]                                            # (TM, V) caller dtype
    tgt = tgt_ref[...]                                        # (TM, 1) int32, -1 = pad
    v = x.shape[-1]

    # numerically stable log-softmax pieces; only `shifted` materialized in f32
    m = jnp.max(x, axis=-1, keepdims=True)                    # (TM, 1)
    shifted = (x - m).astype(jnp.float32)                     # (TM, V)
    lse = jnp.log(jnp.sum(jnp.exp(shifted), axis=-1, keepdims=True))   # (TM, 1)

    # smoothed weights sum to 1  =>  per_tok = lse - sum(w * shifted)
    col = jax.lax.broadcasted_iota(jnp.int32, (1, v), 1)      # (1, V), broadcast by ==
    w = jnp.where(col == tgt, 1.0 - eps + eps / v, eps / v)   # (TM, V) f32
    ws = jnp.sum(w * shifted, axis=-1, keepdims=True)         # (TM, 1)
    per_tok = lse - ws                                        # (TM, 1)

    # select (not multiply) so NaN/Inf from ragged-edge garbage rows can't leak
    valid = tgt >= 0
    tile_sum = jnp.sum(jnp.where(valid, per_tok, 0.0))        # scalar

    out_ref[...] = jnp.full(out_ref.shape, tile_sum, dtype=jnp.float32)


def _tpu_vmem_capacity():
    """Per-core VMEM bytes (generation-aware), with a v7x-safe fallback."""
    try:
        cap = int(pltpu.get_tpu_info().vmem_capacity_bytes)
        return max(32 * 1024 * 1024, min(cap, 128 * 1024 * 1024))
    except Exception:
        return 64 * 1024 * 1024  # conservative: v7x per-TC VMEM


def _pick_tm(n_tokens, v, in_itemsize, vmem_bytes):
    """Largest row tile whose double-buffered working set fits ~half of VMEM,
    additionally capped so the 1-D grid has >= 2 steps (v7x megacore)."""
    if n_tokens < 8:
        return n_tokens                      # block equals the full (tiny) dim
    budget = vmem_bytes // 2
    # 2x double-buffered input rows + ~4 f32 (TM, V) in-kernel temporaries
    bytes_per_row = v * (2 * in_itemsize + 16) + 16
    if 8 * bytes_per_row > budget:
        # TODO(synk): add a V-chunked online-softmax path (2-D grid, V axis
        # "arbitrary", running max/exp-sum/weighted-sum scratch) for vocabularies
        # too large for a single (8, V) resident row block.
        raise NotImplementedError(
            f"vocab={v} too large for the single-row-tile kernel "
            f"({8 * bytes_per_row} B > {budget} B VMEM budget)")
    tm = (budget // bytes_per_row) // 8 * 8
    # keep at least 2 grid steps so both v7x TensorCores get work
    half = (((n_tokens + 1) // 2) + 7) // 8 * 8
    return max(8, min(tm, half))


def label_smoothed_ce(inputs, targets, lengths, eps=EPS):
    """inputs [B,S,V] float, targets [B,S] int, lengths [B] int -> scalar loss."""
    B, S, V = inputs.shape
    N = B * S

    # keep the caller's float dtype (bf16 logits halve the dominant HBM stream)
    x = inputs.reshape(N, V)

    # fold the pack_padded_sequence validity mask into the targets: -1 == pad
    pos = jnp.arange(S, dtype=jnp.int32)[None, :]
    valid = pos < lengths[:, None].astype(jnp.int32)
    tgt = jnp.where(valid, targets.astype(jnp.int32), -1).reshape(N, 1)

    vmem_cap = _tpu_vmem_capacity()
    tm = _pick_tm(N, V, x.dtype.itemsize, vmem_cap)
    grid = pl.cdiv(N, tm)
    n_pad = grid * tm
    if n_pad != N:
        # only the cheap [N,1] targets are padded; the [N,V] logits stay as-is
        # (ragged last block rows are masked in-kernel via tgt == -1)
        tgt = jnp.pad(tgt, ((0, n_pad - N), (0, 0)), constant_values=-1)

    cost = pl.CostEstimate(
        flops=7 * N * V,
        transcendentals=N * V,
        bytes_accessed=N * V * x.dtype.itemsize + n_pad * 4 + grid * 8 * 128 * 4,
    )

    partials = pl.pallas_call(
        functools.partial(_ls_ce_kernel, eps=eps),
        out_shape=jax.ShapeDtypeStruct((grid, 8, 128), jnp.float32),
        grid=(grid,),
        in_specs=[
            pl.BlockSpec((tm, V), lambda i: (i, 0)),   # logits row tile
            pl.BlockSpec((tm, 1), lambda i: (i, 0)),   # targets (-1 = invalid)
        ],
        out_specs=pl.BlockSpec((1, 8, 128), lambda i: (i, 0, 0)),
        compiler_params=pltpu.CompilerParams(
            dimension_semantics=("parallel",),
            vmem_limit_bytes=(vmem_cap * 3) // 4,
        ),
        cost_estimate=cost,
    )(x, tgt)

    loss_sum = jnp.sum(partials[:, 0, 0])
    # token count is known exactly from lengths; no in-kernel counting needed
    tok_cnt = jnp.sum(jnp.minimum(lengths, S)).astype(jnp.float32)
    # NOTE: tok_cnt == 0 (all tokens padded) NaNs, same as the PyTorch reference.
    return loss_sum / tok_cnt


def _reference(inputs, targets, lengths, eps=EPS):
    """Pure-JAX reference matching the PyTorch forward."""
    B, S, V = inputs.shape
    x = inputs.reshape(B * S, V).astype(jnp.float32)
    t = targets.reshape(B * S)
    mask = (jnp.arange(S)[None, :] < lengths[:, None]).reshape(B * S)
    logp = jax.nn.log_softmax(x, axis=-1)
    tv = jax.nn.one_hot(t, V) * (1.0 - eps) + eps / V
    per_tok = -(tv * logp).sum(axis=-1)
    return (per_tok * mask).sum() / mask.sum()


if __name__ == "__main__":
    key = jax.random.PRNGKey(0)
    k1, k2, k3, k4 = jax.random.split(key, 4)

    # main test (tile-multiple N)
    B, S, V = 2, 8, 32
    inputs = jax.random.normal(k1, (B, S, V), dtype=jnp.float32)
    targets = jax.random.randint(k2, (B, S), 0, V, dtype=jnp.int32)
    lengths = jnp.array([6, 8], dtype=jnp.int32)

    loss = jax.block_until_ready(label_smoothed_ce(inputs, targets, lengths))
    ref = _reference(inputs, targets, lengths)
    assert jnp.allclose(loss, ref, rtol=1e-5, atol=1e-5), (loss, ref)

    # ragged-edge test (N = 15 not a multiple of the row tile; no logits pad)
    B2, S2, V2 = 3, 5, 48
    inputs2 = jax.random.normal(k3, (B2, S2, V2), dtype=jnp.float32)
    targets2 = jax.random.randint(k4, (B2, S2), 0, V2, dtype=jnp.int32)
    lengths2 = jnp.array([5, 3, 4], dtype=jnp.int32)

    loss2 = jax.block_until_ready(label_smoothed_ce(inputs2, targets2, lengths2))
    ref2 = _reference(inputs2, targets2, lengths2)
    assert jnp.allclose(loss2, ref2, rtol=1e-5, atol=1e-5), (loss2, ref2)

    print("KERNEL_OK")
</pallas_src>

<mosaic_0001>
module attributes {stable_mosaic.version = 11 : i64} {
  func.func @_ls_ce_kernel(%arg0: i32, %arg1: memref<8x32xf32, #tpu.memory_space<vmem>>, %arg2: memref<8x1xi32, #tpu.memory_space<vmem>>, %arg3: memref<1x8x128xf32, #tpu.memory_space<vmem>>) attributes {dimension_semantics = [#tpu.dimension_semantics<parallel>], iteration_bounds = array<i64: 2>, scalar_prefetch = 0 : i64, scratch_operands = 0 : i64, tpu.core_type = #tpu.core_type<tc>, window_params = [{transform_indices = @transform_0, window_bounds = array<i64: 8, 32>}, {transform_indices = @transform_1, window_bounds = array<i64: 8, 1>}, {transform_indices = @transform_2, window_bounds = array<i64: 1, 8, 128>}]} {
    %c0 = arith.constant 0 : index
    %c0_0 = arith.constant 0 : index
    %0 = vector.load %arg1[%c0, %c0_0] : memref<8x32xf32, #tpu.memory_space<vmem>>, vector<8x32xf32>
    %c0_1 = arith.constant 0 : index
    %c0_2 = arith.constant 0 : index
    %1 = vector.load %arg2[%c0_1, %c0_2] : memref<8x1xi32, #tpu.memory_space<vmem>>, vector<8x1xi32>
    %cst = arith.constant dense<0xFF800000> : vector<8xf32>
    %2 = vector.multi_reduction <maximumf>, %0, %cst [1] : vector<8x32xf32> to vector<8xf32>
    %3 = vector.shape_cast %2 : vector<8xf32> to vector<8x1xf32>
    %4 = vector.broadcast %3 : vector<8x1xf32> to vector<8x32xf32>
    %5 = arith.subf %0, %4 : vector<8x32xf32>
    %6 = math.exp %5 : vector<8x32xf32>
    %cst_3 = arith.constant dense<0.000000e+00> : vector<8xf32>
    %7 = vector.multi_reduction <add>, %6, %cst_3 [1] : vector<8x32xf32> to vector<8xf32>
    %8 = vector.shape_cast %7 : vector<8xf32> to vector<8x1xf32>
    %9 = math.log %8 : vector<8x1xf32>
    %10 = tpu.iota {dimensions = array<i32: 1>} : vector<1x32xi32>
    %11 = vector.broadcast %10 : vector<1x32xi32> to vector<8x32xi32>
    %12 = vector.broadcast %1 : vector<8x1xi32> to vector<8x32xi32>
    %13 = arith.cmpi eq, %11, %12 : vector<8x32xi32>
    %cst_4 = arith.constant 0.903124988 : f32
    %cst_5 = arith.constant 3.125000e-03 : f32
    %14 = vector.broadcast %cst_4 : f32 to vector<8x32xf32>
    %15 = vector.broadcast %cst_5 : f32 to vector<8x32xf32>
    %16 = arith.select %13, %14, %15 : vector<8x32xi1>, vector<8x32xf32>
    %17 = arith.mulf %16, %5 : vector<8x32xf32>
    %cst_6 = arith.constant dense<0.000000e+00> : vector<8xf32>
    %18 = vector.multi_reduction <add>, %17, %cst_6 [1] : vector<8x32xf32> to vector<8xf32>
    %19 = vector.shape_cast %18 : vector<8xf32> to vector<8x1xf32>
    %20 = arith.subf %9, %19 : vector<8x1xf32>
    %c0_i32 = arith.constant 0 : i32
    %21 = vector.broadcast %c0_i32 : i32 to vector<8x1xi32>
    %22 = arith.cmpi sge, %1, %21 : vector<8x1xi32>
    %cst_7 = arith.constant 0.000000e+00 : f32
    %23 = vector.broadcast %cst_7 : f32 to vector<8x1xf32>
    %24 = arith.select %22, %20, %23 : vector<8x1xi1>, vector<8x1xf32>
    %25 = vector.shape_cast %24 : vector<8x1xf32> to vector<1x8x1xf32>
    %cst_8 = arith.constant dense<0.000000e+00> : vector<1xf32>
    %26 = vector.multi_reduction <add>, %25, %cst_8 [1, 2] : vector<1x8x1xf32> to vector<1xf32>
    %27 = vector.shape_cast %26 : vector<1xf32> to vector<1x1x1xf32>
    %28 = vector.extract %27[0, 0, 0] : f32 from vector<1x1x1xf32>
    %29 = vector.broadcast %28 : f32 to vector<1x8x128xf32>
    %c0_9 = arith.constant 0 : index
    %c0_10 = arith.constant 0 : index
    %c0_11 = arith.constant 0 : index
    %30 = vector.load %arg3[%c0_9, %c0_10, %c0_11] : memref<1x8x128xf32, #tpu.memory_space<vmem>>, vector<1x8x128xf32>
    tpu.vector_store %arg3[%c0_9, %c0_10, %c0_11], %29 {strides = array<i32>} : memref<1x8x128xf32, #tpu.memory_space<vmem>>, vector<1x8x128xf32>,
    return
  }
  func.func @transform_0(%arg0: i32) -> (i32, i32) {
    %c0_i32 = arith.constant 0 : i32
    %c0_i32_0 = arith.constant 0 : i32
    return %arg0, %c0_i32 : i32, i32
  }
  func.func @transform_1(%arg0: i32) -> (i32, i32) {
    %c0_i32 = arith.constant 0 : i32
    %c0_i32_0 = arith.constant 0 : i32
    return %arg0, %c0_i32 : i32, i32
  }
  func.func @transform_2(%arg0: i32) -> (i32, i32, i32) {
    %c0_i32 = arith.constant 0 : i32
    %c0_i32_0 = arith.constant 0 : i32
    %c0_i32_1 = arith.constant 0 : i32
    return %arg0, %c0_i32, %c0_i32_0 : i32, i32, i32
  }
}

</mosaic_0001>

<llo_original>
// kernel: tpu_custom_call.1
$region0: #{tpu_custom_call.1}
  #allocation0 [shape = 'u32[]', space=smem, size = 0x4, offset = 0x4, fixed_abs, tag = 'smem constant byte address 0x4 - core index']
  #allocation1 [shape = 'u32[72,128]{1,0:T(1,128)}', space=vmem, size = 0x9000, scoped, tag = 'internal scratch']
  %s0 = inlined_call_operand.vmem [shape: f32[16,32], index: 0, kind: input, shape index: {}]
  %s1 = inlined_call_operand.vmem [shape: s32[16,1], index: 1, kind: input, shape index: {}]
  %s2 = inlined_call_operand.hbm [shape: f32[2,8,128], index: 2, kind: output, shape index: {}]
  %s3 = sld [smem:[#allocation0]]
  $region41: #{tpu_custom_call.1} parent=0
    _
  %s5 = ssub.s32 1, %s3
  %s6 = scalar_select 0, %s5, %s3
  $region1: #{tpu_custom_call.1} parent=0
    #allocation2 [shape = 'u8[8192]{0}', space=vmem, size = 0x2000, scoped, tag = 'output window, operand 0']
    #allocation3 [shape = 's32[2]{0}', space=sflag, size = 0x8, scoped, tag = 'scoped memory for tpu_custom_call.1']
    %7 = vsyncpa [#allocation3], 0
    %s8 = scalar_lea.sflag [#allocation3], 1
    %9 = vsyncpa %s8, 0
    loop: start=0, step=1, limit=4
    $region2: #{tpu_custom_call.1} parent=1 // loop_pre_header
      _
    $region3: #{tpu_custom_call.1} parent=1 // loop_header
      %s11 = sphi 0, %s15
      %p12 = scmp.ge.s32.totalorder %s11, 4
      %s21 = sphi 0, %s23
      %s24 = sphi 0, %s21
      %s25 = sphi 0, %s24
      %s41 = sphi 0, %s25
      %s47 = sphi 0, %s49
      %s50 = sphi 0, %s47
      %s51 = sphi 0, %s50
      %s67 = sphi 0, %s51
      %s73 = sphi 0, %s75
      %s76 = sphi 0, %s73
      %s77 = sphi 0, %s76
      %s93 = sphi 0, %s77
    $region4: #{tpu_custom_call.1} parent=1 // loop_header_branch
      %14 = sbr.rel (%p12) target = $region8
    $region5: #{tpu_custom_call.1} parent=1 // loop_body
      %s16 = ssub.s32 %s11, 1
      %s17 = ssub.s32 %s11, 2
      %s18 = sadd.s32 %s11, 1
      %s19 = ssub.s32 %s11, %s18
      %p20 = scmp.eq.s32.totalorder %s19, 0
      %s22 = sadd.s32 %s21, 1
      %s23 = scalar_select %p20, %s21, %s22
      %p26 = pneg %p20
      %p27 = scmp.eq.s32.totalorder %s11, 1
      %p28 = por %p26, %p27
      %p29 = scmp.ne.s32.totalorder %s21, %s24
      %p30 = scmp.eq.s32.totalorder %s11, 0
      %p31 = por %p29, %p30
      %p32 = scmp.ne.s32.totalorder %s21, %s24
      %p33 = scmp.eq.s32.totalorder %s16, 1
      %p34 = por %p32, %p33
      %p35 = scmp.ne.s32.totalorder %s24, %s25
      %p36 = scmp.eq.s32.totalorder %s16, 0
      %p37 = por %p35, %p36
      %p38 = scmp.ne.s32.totalorder %s24, %s25
      %p39 = scmp.eq.s32.totalorder %s17, 1
      %p40 = por %p38, %p39
      %p42 = scmp.ne.s32.totalorder %s25, %s41
      %p43 = scmp.eq.s32.totalorder %s17, 0
      %p44 = por %p42, %p43
      %s45 = ssub.s32 %s11, %s18
      %p46 = scmp.eq.s32.totalorder %s45, 0
      %s48 = sadd.s32 %s47, 1
      %s49 = scalar_select %p46, %s47, %s48
      %p52 = pneg %p46
      %p53 = scmp.eq.s32.totalorder %s11, 1
      %p54 = por %p52, %p53
      %p55 = scmp.ne.s32.totalorder %s47, %s50
      %p56 = scmp.eq.s32.totalorder %s11, 0
      %p57 = por %p55, %p56
      %p58 = scmp.ne.s32.totalorder %s47, %s50
      %p59 = scmp.eq.s32.totalorder %s16, 1
      %p60 = por %p58, %p59
      %p61 = scmp.ne.s32.totalorder %s50, %s51
      %p62 = scmp.eq.s32.totalorder %s16, 0
      %p63 = por %p61, %p62
      %p64 = scmp.ne.s32.totalorder %s50, %s51
      %p65 = scmp.eq.s32.totalorder %s17, 1
      %p66 = por %p64, %p65
      %p68 = scmp.ne.s32.totalorder %s51, %s67
      %p69 = scmp.eq.s32.totalorder %s17, 0
      %p70 = por %p68, %p69
      %s71 = ssub.s32 %s11, %s18
      %p72 = scmp.eq.s32.totalorder %s71, 0
      %s74 = sadd.s32 %s73, 1
      %s75 = scalar_select %p72, %s73, %s74
      %p78 = pneg %p72
      %p79 = scmp.eq.s32.totalorder %s11, 1
      %p80 = por %p78, %p79
      %p81 = scmp.ne.s32.totalorder %s73, %s76
      %p82 = scmp.eq.s32.totalorder %s11, 0
      %p83 = por %p81, %p82
      %p84 = scmp.ne.s32.totalorder %s73, %s76
      %p85 = scmp.eq.s32.totalorder %s16, 1
      %p86 = por %p84, %p85
      %p87 = scmp.ne.s32.totalorder %s76, %s77
      %p88 = scmp.eq.s32.totalorder %s16, 0
      %p89 = por %p87, %p88
      %p90 = scmp.ne.s32.totalorder %s76, %s77
      %p91 = scmp.eq.s32.totalorder %s17, 1
      %p92 = por %p90, %p91
      %p94 = scmp.ne.s32.totalorder %s77, %s93
      %p95 = scmp.eq.s32.totalorder %s17, 0
      %p96 = por %p94, %p95
      %p97 = scmp.le.s32.totalorder 1, %s11
      %p98 = scmp.lt.s32.totalorder %s11, 3
      %p99 = pnand %p97, %p98
      %p100 = pneg %p99
      // Predicated region
      $region9: #{tpu_custom_call.1} parent=5 // pred_check
        _
      $region10: #{tpu_custom_call.1} parent=5 // pred_check_branch
        %102 = sbr.rel (%p99) target = $region12
      $region11: #{tpu_custom_call.1} parent=5 // pred_region
        %s103 = ssub.s32 %s11, 1
      $region12: #{tpu_custom_call.1} parent=5 // pred_fallthru
        _
      %p104 = scmp.lt.s32.totalorder %s11, 2
      // Predicated region
      $region13: #{tpu_custom_call.1} parent=5 // pred_check
        %p105 = pneg %p104
      $region14: #{tpu_custom_call.1} parent=5 // pred_check_branch
        %107 = sbr.rel (%p105) target = $region16
      $region15: #{tpu_custom_call.1} parent=5 // pred_region
        // Predicated region
        $region17: #{tpu_custom_call.1} parent=15 // pred_check
          %p108 = pneg %p31
        $region18: #{tpu_custom_call.1} parent=15 // pred_check_branch
          %110 = sbr.rel (%p108) target = $region20
        $region19: #{tpu_custom_call.1} parent=15 // pred_region
          %p111 = scmp.lt.s32.totalorder %s11, 1
          %s112 = scalar_select %p111, %s11, 1
          %s113 = smul.addr %s112, 8
          %s114 = scalar_lea.vmem %s0, %s113
        $region20: #{tpu_custom_call.1} parent=15 // pred_fallthru
          _
        // Predicated region
        $region21: #{tpu_custom_call.1} parent=15 // pred_check
          %p115 = pneg %p57
        $region22: #{tpu_custom_call.1} parent=15 // pred_check_branch
          %117 = sbr.rel (%p115) target = $region24
        $region23: #{tpu_custom_call.1} parent=15 // pred_region
          %p118 = scmp.lt.s32.totalorder %s11, 1
          %s119 = scalar_select %p118, %s11, 1
          %s120 = smul.addr %s119, 8
          %s121 = scalar_lea.vmem %s1, %s120
        $region24: #{tpu_custom_call.1} parent=15 // pred_fallthru
          _
      $region16: #{tpu_custom_call.1} parent=5 // pred_fallthru
        _
      %p122 = scmp.le.s32.totalorder 1, %s11
      %p123 = scmp.lt.s32.totalorder %s11, 3
      %p124 = pnand %p122, %p123
      %p125 = pneg %p124
      // Predicated region
      $region25: #{tpu_custom_call.1} parent=5 // pred_check
        _
      $region26: #{tpu_custom_call.1} parent=5 // pred_check_branch
        %127 = sbr.rel (%p124) target = $region28
      $region27: #{tpu_custom_call.1} parent=5 // pred_region
        %s128 = ssub.s32 %s11, 1
        %p129 = scmp.lt.s32.totalorder %s16, 1
        %s130 = scalar_select %p129, %s16, 1
        %s131 = smul.addr %s130, 8
        %s132 = scalar_lea.vmem %s0, %s131
        %p133 = pneg %p37
        %p134 = pneg %p34
        %p135 = scmp.lt.s32.totalorder %s16, 1
        %s136 = scalar_select %p135, %s16, 1
        %s137 = smul.addr %s136, 8
        %s138 = scalar_lea.vmem %s1, %s137
        %p139 = pneg %p63
        %p140 = pneg %p60
        %p141 = pneg %p89
        %p142 = pneg %p86
        %s143 = sand.u32 %s76, 1
        %s144 = scalar_lea.sflag [#allocation3], %s143
        %s145 = sand.u32 %s76, 1
        %s146 = smul.addr %s145, 8
        %s147 = scalar_lea.vmem [#allocation2], %s146
        %p148 = scmp.lt.s32.totalorder %s16, 1
        %s149 = scalar_select %p148, %s16, 1
        %s150 = smul.addr %s149, 8
        %s151 = scalar_lea.vmem %s0, %s150
        %p152 = scmp.lt.s32.totalorder %s16, 1
        %s153 = scalar_select %p152, %s16, 1
        %s154 = smul.addr %s153, 8
        %s155 = scalar_lea.vmem %s1, %s154
        %v156 = vld [vmem:[%s151] sm:$0xff]
        %v157 = vld [vmem:[%s155] sm:$0xff]
        %vm158 = vcmask 261120
        %v159 = vsel %vm158, %v156, -inf
        %160 = vmax.xlane.f32.xlu0 %v159
        %v161 = vpop.xlane.xlu0 %160
        %v162 = vsub.f32 %v156, %v161
        %v163 = vmul.f32 %v162, 1.442695
        %v164 = vpow.pop %v163
        %v165 = vsel %vm158, %v164, 0.0
        %166 = vadd.xlane.f32.xlu0 %v165
        %v167 = vpop.xlane.xlu0 %166
        %v168 = vlog2.pop %v167
        %v169 = vmul.f32 %v168, 0.6931472
        %v170 = vlaneseq
        %v171 = vand.u32 %v170, 127
        %172 = vset.pattern.permute.xlu0 0
        %173 = vperm.xlu0 %172, %v157
        %v174 = vpop.permute.xlu0 %173
        %vm175 = vcmp.eq.s32.totalorder %v171, %v174
        %v176 = vsel %vm175, 0.903125, 0.003125
        %v177 = vmul.f32 %v176, %v162
        %v178 = vsel %vm158, %v177, 0.0
        %179 = vadd.xlane.f32.xlu0 %v178
        %v180 = vpop.xlane.xlu0 %179
        %v181 = vsub.f32 %v169, %v180
        %vm182 = vcmp.ge.s32.totalorder %v157, 0
        %v183 = vsel %vm182, %v181, 0.0
        %vm184 = vcmask 7168
        %v185 = vsel %vm184, %v183, 0.0
        %186 = vadd.xlane.f32.xlu0 %v185
        %v187 = vpop.xlane.xlu0 %186
        %v188 = vrot.slane %v187, 4
        %v189 = vadd.f32 %v187, %v188
        %v190 = vrot.slane %v189, 2
        %v191 = vadd.f32 %v189, %v190
        %v192 = vrot.slane %v191, 1
        %v193 = vadd.f32 %v191, %v192
        %s194 = vtos %v193
        %v195 = vstv %s194
        %196 = vst [vmem:[%s147] sm:$0xff] %v195
        %s197 = sand.u32 %s76, 1
        %s198 = scalar_lea.sflag [#allocation3], %s197
        %s199 = sand.u32 %s76, 1
        %s200 = smul.addr %s199, 8
        %s201 = scalar_lea.vmem [#allocation2], %s200
        // Predicated region
        $region29: #{tpu_custom_call.1} parent=27 // pred_check
          %p202 = pneg %p86
        $region30: #{tpu_custom_call.1} parent=27 // pred_check_branch
          %204 = sbr.rel (%p202) target = $region32
        $region31: #{tpu_custom_call.1} parent=27 // pred_region
          %206 = vsyncadd %s198, 0
          %s207 = smul.addr %s16, 8
          %s208 = scalar_lea.hbm %s2, %s207
          %s210 = sshll.u32 %s201, 4
          %s211 = int_to_ptr.vmem [resolvable:$true] %s210
          %s212 = sshll.u32 %s208, 4
          %s213 = int_to_ptr.hbm [resolvable:$true] %s212
          %215 = dma.vmem_to_hbm [thread:$0]  %s211, 128, %s213, %s198
        $region32: #{tpu_custom_call.1} parent=27 // pred_fallthru
          _
      $region28: #{tpu_custom_call.1} parent=5 // pred_fallthru
        _
      %p216 = scmp.le.s32.totalorder 2, %s11
      // Predicated region
      $region33: #{tpu_custom_call.1} parent=5 // pred_check
        %p217 = pneg %p216
      $region34: #{tpu_custom_call.1} parent=5 // pred_check_branch
        %219 = sbr.rel (%p217) target = $region36
      $region35: #{tpu_custom_call.1} parent=5 // pred_region
        %s220 = ssub.s32 %s11, 2
        // Predicated region
        $region37: #{tpu_custom_call.1} parent=35 // pred_check
          %p221 = pneg %p92
        $region38: #{tpu_custom_call.1} parent=35 // pred_check_branch
          %223 = sbr.rel (%p221) target = $region40
        $region39: #{tpu_custom_call.1} parent=35 // pred_region
          %s224 = sand.u32 %s77, 1
          %s225 = scalar_lea.sflag [#allocation3], %s224
          %s226 = sand.u32 %s77, 1
          %s227 = smul.addr %s226, 8
          %s228 = scalar_lea.vmem [#allocation2], %s227
          %230 = dma.done %s225, 128
        $region40: #{tpu_custom_call.1} parent=35 // pred_fallthru
          _
      $region36: #{tpu_custom_call.1} parent=5 // pred_fallthru
        _
    $region6: #{tpu_custom_call.1} parent=1 // loop_footer
      %s15 = sadd.s32 1, %s11
    $region7: #{tpu_custom_call.1} parent=1 // loop_footer_branch
      %10 = sbr.rel target = $region3
    $region8: #{tpu_custom_call.1} parent=1 // loop_exit
      _
    %231 = vsyncpa [#allocation3], 1
    %s232 = scalar_lea.sflag [#allocation3], 1
    %233 = vsyncpa %s232, 1

</llo_original>
